<compile_context>
chip_gen: v7x
topology: tpu7x:2x2x1
jax: 0.10.0
libtpu: 0.0.40
codegen_flags: <defaults>
</compile_context>

<pallas_src>
import numpy as np
import jax
import jax.numpy as jnp
from jax.experimental import pallas as pl
from jax.experimental.pallas import tpu as pltpu


def make_sinusoid_table(n_position: int, model_d: int) -> jnp.ndarray:
    """Deterministic sinusoid position-encoding table, shape (1, n_position, model_d), fp32."""
    pos = np.arange(n_position)[:, None].astype(np.float64)           # (P, 1)
    dim = np.arange(model_d)[None, :]                                  # (1, D)
    angle = pos / np.power(10000.0, 2 * (dim // 2) / model_d)          # (P, D)
    table = np.empty((n_position, model_d), dtype=np.float64)
    table[:, 0::2] = np.sin(angle[:, 0::2])
    table[:, 1::2] = np.cos(angle[:, 1::2])
    return jnp.asarray(table[None, ...], dtype=jnp.float32)            # (1, P, D)


def _pos_add_kernel(x_ref, pos_ref, o_ref):
    # Pure VPU elementwise add; pos broadcasts over the (folded) batch axis.
    # Mixed dtypes (e.g. bf16 x + f32 pos) promote here, matching torch.
    o_ref[...] = (x_ref[...] + pos_ref[...]).astype(o_ref.dtype)


# Total VMEM the pipeline buffers may use (x + pos + out, each double-buffered).
_PIPELINE_VMEM_BUDGET = 24 * 1024 * 1024
# Explicit scoped-VMEM limit: above v5e's 16 MiB default, within v7x's 64 MiB physical.
_VMEM_LIMIT_BYTES = 32 * 1024 * 1024

_LANE_WIDTHS = (1024, 896, 768, 640, 512, 384, 256, 128)


def _choose_lane_width(L: int):
    for c in _LANE_WIDTHS:
        if L % c == 0:
            return c
    return None


def positional_encoding(x: jnp.ndarray, pos_table: jnp.ndarray, *, max_block_rows=None) -> jnp.ndarray:
    """x: (B, S, D); pos_table: (1, P, D) fp32.  Returns x + pos_table[:, :S, :]."""
    B, S, D = x.shape
    _, P, Dp = pos_table.shape
    assert Dp == D, "model_d mismatch between x and pos_table"
    assert S <= P, "sequence length exceeds positional table"

    out_dtype = jnp.result_type(x.dtype, pos_table.dtype)   # torch-style promotion; table stays fp32
    L = S * D
    x_item = jnp.dtype(x.dtype).itemsize
    p_item = jnp.dtype(pos_table.dtype).itemsize
    o_item = jnp.dtype(out_dtype).itemsize

    cost = pl.CostEstimate(
        flops=B * L,
        transcendentals=0,
        bytes_accessed=(B * x_item + p_item + B * o_item) * L,
    )
    cparams_1d = pltpu.CompilerParams(
        dimension_semantics=("parallel",),
        vmem_limit_bytes=_VMEM_LIMIT_BYTES,
    )

    C = _choose_lane_width(L)
    if C is None:
        # Rare fallback: S*D not a multiple of 128.  One full-extent block
        # (block == full array dims is always legal), batch folded, grid=(1,).
        # TODO(synk): tile this path if L is ever both huge and non-128-aligned.
        x_flat = x.reshape(B, 1, L)
        pos_flat = pos_table[:, :S, :].reshape(1, 1, L)
        out = pl.pallas_call(
            _pos_add_kernel,
            out_shape=jax.ShapeDtypeStruct((B, 1, L), out_dtype),
            grid_spec=pltpu.PrefetchScalarGridSpec(
                num_scalar_prefetch=0,
                grid=(1,),
                in_specs=[
                    pl.BlockSpec((B, 1, L), lambda j: (0, 0, 0)),
                    pl.BlockSpec((1, 1, L), lambda j: (0, 0, 0)),
                ],
                out_specs=pl.BlockSpec((B, 1, L), lambda j: (0, 0, 0)),
            ),
            compiler_params=cparams_1d,
            cost_estimate=cost,
        )(x_flat, pos_flat)
        return out.reshape(B, S, D)

    # Lane-dense 2-D path.  The contiguous row-major reshape guarantees that
    # row r of the (R, C) view holds flattened positions [r*C, (r+1)*C) of
    # pos_table[:, :S, :], so x rows and pos rows line up exactly.
    R = L // C
    x2 = x.reshape(B, R, C)

    # Can we fold the whole batch into one block?  (2x double-buffering on
    # x, pos and out.)
    bytes_per_row_folded = 2 * C * (B * x_item + p_item + B * o_item)
    rows_budget = max(_PIPELINE_VMEM_BUDGET // bytes_per_row_folded, 1)
    fold_batch = rows_budget >= min(R, 8)

    if fold_batch:
        tR = R if R < 8 else min((rows_budget // 8) * 8, R)
        if max_block_rows is not None:
            tR = max(min(tR, int(max_block_rows)), 1)
        # Legality: row-tile must be a multiple of 8 or equal the full extent.
        if tR != R and tR % 8 != 0:
            tR = max((tR // 8) * 8, min(8, R))

        # Use the full table (no wrapper-side slice/copy) when it reshapes
        # cleanly and the 8-aligned row tile keeps the block legal; otherwise
        # slice [:S] once (tiny copy) so block dims equal the full extents.
        if (P * D) % C == 0 and (tR % 8 == 0 or (P * D) // C == R):
            pos2 = pos_table.reshape(1, (P * D) // C, C)
        else:
            pos2 = pos_table[:, :S, :].reshape(1, R, C)
        # Note: if R % tR != 0, the partial last block's extra pos rows read
        # real (in-bounds) table data; the corresponding output lanes are
        # masked, so this is benign.

        n_tiles = pl.cdiv(R, tR)
        out = pl.pallas_call(
            _pos_add_kernel,
            out_shape=jax.ShapeDtypeStruct((B, R, C), out_dtype),
            grid_spec=pltpu.PrefetchScalarGridSpec(
                num_scalar_prefetch=0,
                grid=(n_tiles,),
                in_specs=[
                    pl.BlockSpec((B, tR, C), lambda j: (0, j, 0)),   # x slab (batch folded)
                    pl.BlockSpec((1, tR, C), lambda j: (0, j, 0)),   # shared pos slab
                ],
                out_specs=pl.BlockSpec((B, tR, C), lambda j: (0, j, 0)),
            ),
            compiler_params=cparams_1d,
            cost_estimate=cost,
        )(x2, pos2)
        return out.reshape(B, S, D)

    # Batch too large to fold: tile rows per batch element, batch axis
    # innermost so consecutive grid steps hit the same pos block index and its
    # DMA is skipped.
    bytes_per_row = 2 * C * (x_item + p_item + o_item)
    rows_budget = max(_PIPELINE_VMEM_BUDGET // bytes_per_row, 8)
    tR = R if R < 8 else min((rows_budget // 8) * 8, R)
    if (P * D) % C == 0 and (tR % 8 == 0 or (P * D) // C == R):
        pos2 = pos_table.reshape(1, (P * D) // C, C)
    else:
        pos2 = pos_table[:, :S, :].reshape(1, R, C)
    n_tiles = pl.cdiv(R, tR)
    out = pl.pallas_call(
        _pos_add_kernel,
        out_shape=jax.ShapeDtypeStruct((B, R, C), out_dtype),
        grid_spec=pltpu.PrefetchScalarGridSpec(
            num_scalar_prefetch=0,
            grid=(n_tiles, B),
            in_specs=[
                pl.BlockSpec((1, tR, C), lambda j, b: (b, j, 0)),
                pl.BlockSpec((1, tR, C), lambda j, b: (0, j, 0)),
            ],
            out_specs=pl.BlockSpec((1, tR, C), lambda j, b: (b, j, 0)),
        ),
        compiler_params=pltpu.CompilerParams(
            dimension_semantics=("parallel", "parallel"),
            vmem_limit_bytes=_VMEM_LIMIT_BYTES,
        ),
        cost_estimate=cost,
    )(x2, pos2)
    return out.reshape(B, S, D)


if __name__ == "__main__":
    key = jax.random.PRNGKey(0)

    # 1) Module config from the spec scale: model_d=32, n_position=16, B=2, S=8.
    model_d, n_position, B, S = 32, 16, 2, 8
    k1, k2, k3 = jax.random.split(key, 3)
    x = jax.random.normal(k1, (B, S, model_d), dtype=jnp.float32)
    pos_table = make_sinusoid_table(n_position, model_d)
    ref = x + pos_table[:, :S, :]
    out = jax.block_until_ready(positional_encoding(x, pos_table))
    assert out.shape == (B, S, model_d)
    assert bool(jnp.allclose(out, ref, atol=1e-6, rtol=1e-6)), "mismatch vs reference"

    # 2) Larger shape exercising the multi-tile, batch-folded, unsliced-pos path
    #    (C=1024, R=32, tR=8 -> grid=(4,)).
    B2, S2, D2, P2 = 3, 128, 256, 256
    x_big = jax.random.normal(k2, (B2, S2, D2), dtype=jnp.float32)
    pos_big = make_sinusoid_table(P2, D2)
    ref_big = x_big + pos_big[:, :S2, :]
    out_big = jax.block_until_ready(positional_encoding(x_big, pos_big, max_block_rows=8))
    assert bool(jnp.allclose(out_big, ref_big, atol=1e-5, rtol=1e-5)), "mismatch vs reference (tiled)"

    # 3) Non-128-aligned D exercising the full-extent fallback path.
    D3 = 24
    x_odd = jax.random.normal(k3, (B, S, D3), dtype=jnp.float32)
    pos_odd = make_sinusoid_table(n_position, D3)
    ref_odd = x_odd + pos_odd[:, :S, :]
    out_odd = jax.block_until_ready(positional_encoding(x_odd, pos_odd))
    assert bool(jnp.allclose(out_odd, ref_odd, atol=1e-6, rtol=1e-6)), "mismatch vs reference (fallback)"

    print("KERNEL_OK")
</pallas_src>

<mosaic_0001>
module attributes {stable_mosaic.version = 11 : i64} {
  func.func @_pos_add_kernel(%arg0: i32, %arg1: memref<2x1x256xf32, #tpu.memory_space<vmem>>, %arg2: memref<1x1x256xf32, #tpu.memory_space<vmem>>, %arg3: memref<2x1x256xf32, #tpu.memory_space<vmem>>) attributes {dimension_semantics = [#tpu.dimension_semantics<parallel>], iteration_bounds = array<i64: 1>, scalar_prefetch = 0 : i64, scratch_operands = 0 : i64, tpu.core_type = #tpu.core_type<tc>, window_params = [{transform_indices = @transform_0, window_bounds = array<i64: 2, 1, 256>}, {transform_indices = @transform_1, window_bounds = array<i64: 1, 1, 256>}, {transform_indices = @transform_2, window_bounds = array<i64: 2, 1, 256>}]} {
    %c0 = arith.constant 0 : index
    %c0_0 = arith.constant 0 : index
    %c0_1 = arith.constant 0 : index
    %0 = vector.load %arg1[%c0, %c0_0, %c0_1] : memref<2x1x256xf32, #tpu.memory_space<vmem>>, vector<2x1x256xf32>
    %c0_2 = arith.constant 0 : index
    %c0_3 = arith.constant 0 : index
    %c0_4 = arith.constant 0 : index
    %1 = vector.load %arg2[%c0_2, %c0_3, %c0_4] : memref<1x1x256xf32, #tpu.memory_space<vmem>>, vector<1x1x256xf32>
    %2 = vector.broadcast %1 : vector<1x1x256xf32> to vector<2x1x256xf32>
    %3 = arith.addf %0, %2 : vector<2x1x256xf32>
    %c0_5 = arith.constant 0 : index
    %c0_6 = arith.constant 0 : index
    %c0_7 = arith.constant 0 : index
    %4 = vector.load %arg3[%c0_5, %c0_6, %c0_7] : memref<2x1x256xf32, #tpu.memory_space<vmem>>, vector<2x1x256xf32>
    tpu.vector_store %arg3[%c0_5, %c0_6, %c0_7], %3 {strides = array<i32>} : memref<2x1x256xf32, #tpu.memory_space<vmem>>, vector<2x1x256xf32>,
    return
  }
  func.func @transform_0(%arg0: i32) -> (i32, i32, i32) {
    %c0_i32 = arith.constant 0 : i32
    %c0_i32_0 = arith.constant 0 : i32
    %c0_i32_1 = arith.constant 0 : i32
    return %c0_i32, %arg0, %c0_i32_0 : i32, i32, i32
  }
  func.func @transform_1(%arg0: i32) -> (i32, i32, i32) {
    %c0_i32 = arith.constant 0 : i32
    %c0_i32_0 = arith.constant 0 : i32
    %c0_i32_1 = arith.constant 0 : i32
    return %c0_i32, %arg0, %c0_i32_0 : i32, i32, i32
  }
  func.func @transform_2(%arg0: i32) -> (i32, i32, i32) {
    %c0_i32 = arith.constant 0 : i32
    %c0_i32_0 = arith.constant 0 : i32
    %c0_i32_1 = arith.constant 0 : i32
    return %c0_i32, %arg0, %c0_i32_0 : i32, i32, i32
  }
}

</mosaic_0001>

<llo_original>
// kernel: tpu_custom_call.1
$region0: #{tpu_custom_call.1}
  #allocation0 [shape = 'u32[]', space=smem, size = 0x4, offset = 0x4, fixed_abs, tag = 'smem constant byte address 0x4 - core index']
  #allocation1 [shape = 'u32[144,128]{1,0:T(1,128)}', space=vmem, size = 0x12000, scoped, tag = 'internal scratch']
  %s0 = inlined_call_operand.hbm [shape: f32[2,1,256], index: 0, kind: input, shape index: {}]
  %s1 = inlined_call_operand.vmem [shape: f32[1,1,256], index: 1, kind: input, shape index: {}]
  %s2 = inlined_call_operand.hbm [shape: f32[2,1,256], index: 2, kind: output, shape index: {}]
  %s3 = sld [smem:[#allocation0]]
  $region22: #{tpu_custom_call.1} parent=0
    _
  %s5 = ssub.s32 1, %s3
  %s6 = scalar_select 0, %s5, %s3
  $region1: #{tpu_custom_call.1} parent=0
    #allocation2 [shape = 'u8[2048]{0}', space=vmem, size = 0x800, scoped, tag = 'input window, operand 0, single buffered']
    #allocation3 [shape = 's32[1]{0}', space=sflag, size = 0x4, scoped, tag = 'scoped memory for tpu_custom_call.1']
    #allocation4 [shape = 's32[1]{0}', space=sflag, size = 0x4, scoped, tag = 'scoped memory for tpu_custom_call.1']
    #allocation5 [shape = 'u8[2048]{0}', space=vmem, size = 0x800, scoped, tag = 'output window, operand 0, single buffered']
    %7 = vsyncpa [#allocation3], 0
    %8 = vsyncpa [#allocation4], 0
    // Predicated region
    $region2: #{tpu_custom_call.1} parent=1 // pred_check
      _
    $region3: #{tpu_custom_call.1} parent=1 // pred_check_branch
      %10 = sbr.rel (0) target = $region5
    $region4: #{tpu_custom_call.1} parent=1 // pred_region
      %s12 = ssub.s32 64, 64
      %13 = vsyncadd [#allocation3], %s12
      %s14 = sshll.u32 [#allocation2], 4
      %s15 = int_to_ptr.vmem [resolvable:$true] %s14
      %20 = dma.hbm_to_vmem [thread:$0]  %s0, 64, %s15, [#allocation3], 32, 32, 2
    $region5: #{tpu_custom_call.1} parent=1 // pred_fallthru
      _
    // Predicated region
    $region6: #{tpu_custom_call.1} parent=1 // pred_check
      _
    $region7: #{tpu_custom_call.1} parent=1 // pred_check_branch
      %22 = sbr.rel (0) target = $region9
    $region8: #{tpu_custom_call.1} parent=1 // pred_region
      _
    $region9: #{tpu_custom_call.1} parent=1 // pred_fallthru
      _
    // Predicated region
    $region10: #{tpu_custom_call.1} parent=1 // pred_check
      _
    $region11: #{tpu_custom_call.1} parent=1 // pred_check_branch
      %24 = sbr.rel (0) target = $region13
    $region12: #{tpu_custom_call.1} parent=1 // pred_region
      %25 = dma.done [#allocation3], 64
    $region13: #{tpu_custom_call.1} parent=1 // pred_fallthru
      _
    %v26 = vld [vmem:[#allocation2] sm:$0x3]
    %v27 = vld [vmem:[#allocation2 + $0x2] sm:$0x3]
    %v28 = vld [vmem:[%s1] sm:$0x3]
    %v29 = vadd.f32 %v26, %v28
    %v30 = vadd.f32 %v27, %v28
    %v31 = vlaneseq
    %vm32 = vcmp.ge.s32.totalorder %v31, 0
    %vm33 = vcmp.lt.s32.totalorder %v31, 256
    %vm34 = vmand %vm32, %vm33
    %35 = vst.msk [vmem:[#allocation5] sm:$0x3] %vm34, %v29
    %36 = vst.msk [vmem:[#allocation5 + $0x2] sm:$0x3] %vm34, %v30
    // Predicated region
    $region14: #{tpu_custom_call.1} parent=1 // pred_check
      _
    $region15: #{tpu_custom_call.1} parent=1 // pred_check_branch
      %38 = sbr.rel (0) target = $region17
    $region16: #{tpu_custom_call.1} parent=1 // pred_region
      %s40 = ssub.s32 64, 64
      %41 = vsyncadd [#allocation4], %s40
      %s42 = sshll.u32 [#allocation5], 4
      %s43 = int_to_ptr.vmem [resolvable:$true] %s42
      %48 = dma.vmem_to_hbm [thread:$0]  %s43, 64, %s2, [#allocation4], 32, 32, 2
    $region17: #{tpu_custom_call.1} parent=1 // pred_fallthru
      _
    // Predicated region
    $region18: #{tpu_custom_call.1} parent=1 // pred_check
      _
    $region19: #{tpu_custom_call.1} parent=1 // pred_check_branch
      %50 = sbr.rel (0) target = $region21
    $region20: #{tpu_custom_call.1} parent=1 // pred_region
      %51 = dma.done [#allocation4], 64
    $region21: #{tpu_custom_call.1} parent=1 // pred_fallthru
      _
    %52 = vsyncpa [#allocation3], 1
    %53 = vsyncpa [#allocation4], 1

</llo_original>
